<compile_context>
chip_gen: v7x
topology: tpu7x:2x2x1
jax: 0.10.0
libtpu: 0.0.40
codegen_flags: <defaults>
</compile_context>

<pallas_src>
import functools

import jax
import jax.numpy as jnp
from jax.experimental import pallas as pl
from jax.experimental.pallas import tpu as pltpu


def _disc_kernel(z_ref, w1_ref, b1_ref, w2_ref, b2_ref, w3_ref, b3_ref, o_ref):
    """Fused 3-layer MLP + sigmoid for one batch tile; everything in VMEM."""
    mm_dtype = w1_ref.dtype   # bf16 (or f32 for exact-parity mode)

    # Layer 1: (tm, z_dim) @ (z_dim, H) on the MXU. z arrives as f32 straight
    # from HBM (no wrapper cast pass) and is narrowed in-register.
    h1 = jnp.dot(z_ref[...].astype(mm_dtype), w1_ref[...],
                 preferred_element_type=jnp.float32)
    h1 = jnp.maximum(h1 + b1_ref[...], 0.0)                    # f32 bias + ReLU

    # Layer 2: (tm, H) @ (H, H) on the MXU.
    h2 = jnp.dot(h1.astype(mm_dtype), w2_ref[...],
                 preferred_element_type=jnp.float32)
    h2 = jnp.maximum(h2 + b2_ref[...], 0.0)

    # Layer 3 (H -> 1) on the MXU: contract w3 (1, H) against h2 (tm, H) along
    # H, yielding a lane-dense (1, tm) logits row (batch on lanes). ~0.26 MMACs
    # vs ~200 MMACs for L1+L2, essentially free, and no XLU reduce/relayout.
    logits = jax.lax.dot_general(
        w3_ref[...], h2.astype(mm_dtype),
        dimension_numbers=(((1,), (1,)), ((), ())),
        preferred_element_type=jnp.float32)                    # (1, tm)

    # f32 epilogue (v5e-friendly): bias (scalar from SMEM) + sigmoid.
    o_ref[...] = jax.nn.sigmoid(logits + b3_ref[0]).astype(o_ref.dtype)


def _round_up(x, m):
    return ((x + m - 1) // m) * m


@functools.partial(jax.jit, static_argnames=("tm",))
def discriminator_forward(z, w1, b1, w2, b2, w3, b3, *, tm=1024):
    """Forward pass of the Discriminator. Returns sigmoid probabilities (B, 1)."""
    B, z_dim = z.shape
    H = w1.shape[1]                                   # 512

    if B <= 128:
        # Whole batch in one tile; block shape equals full array dims, so any
        # small B is legal and there is no padding / ragged edge at all.
        tm_eff = B
    else:
        # Tiles are multiples of 128 (full MXU row groups, unmasked lane-dense
        # output stores) and the grid has at least 2 tiles so
        # dimension_semantics=("parallel",) can shard across both v7x
        # TensorCores (a no-op on single-TC v5e/v6e).
        b128 = _round_up(B, 128)
        tm_eff = min(tm, max(128, _round_up(b128 // 2, 128)))

    n_tiles = -(-B // tm_eff)   # ragged last tile handled by Pallas edge blocks

    out = pl.pallas_call(
        _disc_kernel,
        out_shape=jax.ShapeDtypeStruct((1, B), jnp.float32),
        grid_spec=pltpu.PrefetchScalarGridSpec(
            num_scalar_prefetch=0,
            grid=(n_tiles,),
            in_specs=[
                pl.BlockSpec((tm_eff, z_dim), lambda i: (i, 0)),     # z tile (f32)
                pl.BlockSpec((z_dim, H), lambda i: (0, 0)),          # W1 (whole)
                pl.BlockSpec((1, H), lambda i: (0, 0)),              # b1
                pl.BlockSpec((H, H), lambda i: (0, 0)),              # W2 (whole)
                pl.BlockSpec((1, H), lambda i: (0, 0)),              # b2
                pl.BlockSpec((1, H), lambda i: (0, 0)),              # W3 row (whole)
                pl.BlockSpec(memory_space=pltpu.MemorySpace.SMEM),   # b3 scalar
            ],
            # Lane-dense output: batch mapped to lanes, one (1, tm) row per step.
            out_specs=pl.BlockSpec((1, tm_eff), lambda i: (0, i)),
        ),
        compiler_params=pltpu.CompilerParams(
            dimension_semantics=("parallel",),
        ),
    )(z, w1, b1, w2, b2, w3, b3)

    # Back to the torch-style (B, 1) shape.
    return out[0, :].reshape(B, 1)


def init_params(key, z_dim=256, hidden=512):
    """Deterministic kaiming_normal (fan_in, gain=sqrt(2)) weights, zero biases.

    torch's Linear weight is (out, in); we keep the transposed (in, out) layout
    so the kernel's matmul is `z @ W`. The final layer is stored as a (1, hidden)
    row. std = sqrt(2 / fan_in) matches init.kaiming_normal defaults.
    """
    k1, k2, k3 = jax.random.split(key, 3)
    w1 = jax.random.normal(k1, (z_dim, hidden), jnp.float32) * jnp.sqrt(2.0 / z_dim)
    b1 = jnp.zeros((1, hidden), jnp.float32)
    w2 = jax.random.normal(k2, (hidden, hidden), jnp.float32) * jnp.sqrt(2.0 / hidden)
    b2 = jnp.zeros((1, hidden), jnp.float32)
    w3 = jax.random.normal(k3, (1, hidden), jnp.float32) * jnp.sqrt(2.0 / hidden)
    b3 = jnp.zeros((1,), jnp.float32)
    return w1, b1, w2, b2, w3, b3


def prepare_params(w1, b1, w2, b2, w3, b3, matmul_dtype=jnp.bfloat16):
    """One-time conversion of the MXU operands to bf16, OUTSIDE the per-call path.

    Biases stay f32 (epilogue runs in f32 on every generation). Pass
    matmul_dtype=jnp.float32 if exact parity with an f32 reference is needed.
    """
    return (w1.astype(matmul_dtype), b1.astype(jnp.float32),
            w2.astype(matmul_dtype), b2.astype(jnp.float32),
            w3.astype(matmul_dtype), b3.astype(jnp.float32))


def reference_forward(z, w1, b1, w2, b2, w3, b3):
    """Pure-JAX f32 reference matching the torch module."""
    h1 = jnp.maximum(z @ w1 + b1, 0.0)
    h2 = jnp.maximum(h1 @ w2 + b2, 0.0)
    logits = h2 @ w3.T + b3[None, :]
    return jax.nn.sigmoid(logits)


if __name__ == "__main__":
    key = jax.random.PRNGKey(0)
    k_params, k_z1, k_z2 = jax.random.split(key, 3)

    Z_DIM = 256
    params_f32 = init_params(k_params, z_dim=Z_DIM, hidden=512)
    params_krn = prepare_params(*params_f32)      # bf16 MXU weights, done once

    # Case 1: small batch — single whole-batch tile (block == full array dims).
    z_small = jax.random.normal(k_z1, (8, Z_DIM), jnp.float32)
    out_small = jax.block_until_ready(discriminator_forward(z_small, *params_krn))
    ref_small = reference_forward(z_small, *params_f32)
    assert out_small.shape == (8, 1)
    assert jnp.allclose(out_small, ref_small, atol=3e-2, rtol=0), (
        float(jnp.max(jnp.abs(out_small - ref_small))))

    # Case 2: ragged batch (200 rows) — two 128-row tiles (parallel grid,
    # megacore-shardable on v7x); the second tile is a Pallas edge block, so no
    # wrapper-side jnp.pad copy of z is ever made.
    z_big = jax.random.normal(k_z2, (200, Z_DIM), jnp.float32)
    out_big = jax.block_until_ready(discriminator_forward(z_big, *params_krn))
    ref_big = reference_forward(z_big, *params_f32)
    assert out_big.shape == (200, 1)
    assert jnp.allclose(out_big, ref_big, atol=3e-2, rtol=0), (
        float(jnp.max(jnp.abs(out_big - ref_big))))

    print("KERNEL_OK")
</pallas_src>

<mosaic_0001>
module attributes {stable_mosaic.version = 11 : i64} {
  func.func @_disc_kernel(%arg0: i32, %arg1: memref<8x256xf32, #tpu.memory_space<vmem>>, %arg2: memref<256x512xbf16, #tpu.memory_space<vmem>>, %arg3: memref<1x512xf32, #tpu.memory_space<vmem>>, %arg4: memref<512x512xbf16, #tpu.memory_space<vmem>>, %arg5: memref<1x512xf32, #tpu.memory_space<vmem>>, %arg6: memref<1x512xbf16, #tpu.memory_space<vmem>>, %arg7: memref<1xf32, #tpu.memory_space<smem>>, %arg8: memref<1x8xf32, #tpu.memory_space<vmem>>) attributes {dimension_semantics = [#tpu.dimension_semantics<parallel>], iteration_bounds = array<i64: 1>, scalar_prefetch = 0 : i64, scratch_operands = 0 : i64, tpu.core_type = #tpu.core_type<tc>, window_params = [{transform_indices = @transform_0, window_bounds = array<i64: 8, 256>}, {pipeline_mode = #tpu.pipeline_mode<synchronous>, transform_indices = @transform_1, window_bounds = array<i64: 256, 512>}, {pipeline_mode = #tpu.pipeline_mode<synchronous>, transform_indices = @transform_2, window_bounds = array<i64: 1, 512>}, {pipeline_mode = #tpu.pipeline_mode<synchronous>, transform_indices = @transform_3, window_bounds = array<i64: 512, 512>}, {pipeline_mode = #tpu.pipeline_mode<synchronous>, transform_indices = @transform_4, window_bounds = array<i64: 1, 512>}, {pipeline_mode = #tpu.pipeline_mode<synchronous>, transform_indices = @transform_5, window_bounds = array<i64: 1, 512>}, {transform_indices = @transform_6, window_bounds = array<i64: 1>}, {transform_indices = @transform_7, window_bounds = array<i64: 1, 8>}]} {
    %c0 = arith.constant 0 : index
    %c0_0 = arith.constant 0 : index
    %0 = vector.load %arg1[%c0, %c0_0] : memref<8x256xf32, #tpu.memory_space<vmem>>, vector<8x256xf32>
    %1 = arith.truncf %0 : vector<8x256xf32> to vector<8x256xbf16>
    %c0_1 = arith.constant 0 : index
    %c0_2 = arith.constant 0 : index
    %2 = vector.load %arg2[%c0_1, %c0_2] : memref<256x512xbf16, #tpu.memory_space<vmem>>, vector<256x512xbf16>
    %cst = arith.constant dense<0.000000e+00> : vector<8x512xf32>
    %3 = tpu.matmul %1, %2, %cst {dimension_numbers = #tpu.dot_dimension_numbers<[1], [0], [0], [1], [0, 0, 1, 1], [], []>} : vector<8x256xbf16>, vector<256x512xbf16>, vector<8x512xf32> -> vector<8x512xf32>
    %c0_3 = arith.constant 0 : index
    %c0_4 = arith.constant 0 : index
    %4 = vector.load %arg3[%c0_3, %c0_4] : memref<1x512xf32, #tpu.memory_space<vmem>>, vector<1x512xf32>
    %5 = vector.broadcast %4 : vector<1x512xf32> to vector<8x512xf32>
    %6 = arith.addf %3, %5 : vector<8x512xf32>
    %cst_5 = arith.constant 0.000000e+00 : f32
    %7 = vector.broadcast %cst_5 : f32 to vector<8x512xf32>
    %8 = arith.maximumf %6, %7 : vector<8x512xf32>
    %9 = arith.truncf %8 : vector<8x512xf32> to vector<8x512xbf16>
    %c0_6 = arith.constant 0 : index
    %c0_7 = arith.constant 0 : index
    %10 = vector.load %arg4[%c0_6, %c0_7] : memref<512x512xbf16, #tpu.memory_space<vmem>>, vector<512x512xbf16>
    %cst_8 = arith.constant dense<0.000000e+00> : vector<8x512xf32>
    %11 = tpu.matmul %9, %10, %cst_8 {dimension_numbers = #tpu.dot_dimension_numbers<[1], [0], [0], [1], [0, 0, 1, 1], [], []>} : vector<8x512xbf16>, vector<512x512xbf16>, vector<8x512xf32> -> vector<8x512xf32>
    %c0_9 = arith.constant 0 : index
    %c0_10 = arith.constant 0 : index
    %12 = vector.load %arg5[%c0_9, %c0_10] : memref<1x512xf32, #tpu.memory_space<vmem>>, vector<1x512xf32>
    %13 = vector.broadcast %12 : vector<1x512xf32> to vector<8x512xf32>
    %14 = arith.addf %11, %13 : vector<8x512xf32>
    %cst_11 = arith.constant 0.000000e+00 : f32
    %15 = vector.broadcast %cst_11 : f32 to vector<8x512xf32>
    %16 = arith.maximumf %14, %15 : vector<8x512xf32>
    %c0_12 = arith.constant 0 : index
    %c0_13 = arith.constant 0 : index
    %17 = vector.load %arg6[%c0_12, %c0_13] : memref<1x512xbf16, #tpu.memory_space<vmem>>, vector<1x512xbf16>
    %18 = arith.truncf %16 : vector<8x512xf32> to vector<8x512xbf16>
    %cst_14 = arith.constant dense<0.000000e+00> : vector<1x8xf32>
    %19 = tpu.matmul %17, %18, %cst_14 {dimension_numbers = #tpu.dot_dimension_numbers<[1], [1], [0], [0], [0, 0, 1, 0], [], []>} : vector<1x512xbf16>, vector<8x512xbf16>, vector<1x8xf32> -> vector<1x8xf32>
    %c0_15 = arith.constant 0 : index
    %20 = memref.load %arg7[%c0_15] : memref<1xf32, #tpu.memory_space<smem>>
    %21 = vector.broadcast %20 : f32 to vector<1x8xf32>
    %22 = arith.addf %19, %21 : vector<1x8xf32>
    %23 = arith.negf %22 : vector<1x8xf32>
    %24 = math.exp %23 : vector<1x8xf32>
    %cst_16 = arith.constant 1.000000e+00 : f32
    %25 = vector.broadcast %cst_16 : f32 to vector<1x8xf32>
    %26 = arith.addf %25, %24 : vector<1x8xf32>
    %27 = arith.divf %25, %26 : vector<1x8xf32>
    %c0_17 = arith.constant 0 : index
    %c0_18 = arith.constant 0 : index
    %28 = vector.load %arg8[%c0_17, %c0_18] : memref<1x8xf32, #tpu.memory_space<vmem>>, vector<1x8xf32>
    tpu.vector_store %arg8[%c0_17, %c0_18], %27 {strides = array<i32>} : memref<1x8xf32, #tpu.memory_space<vmem>>, vector<1x8xf32>,
    return
  }
  func.func @transform_0(%arg0: i32) -> (i32, i32) {
    %c0_i32 = arith.constant 0 : i32
    %c0_i32_0 = arith.constant 0 : i32
    return %arg0, %c0_i32 : i32, i32
  }
  func.func @transform_1(%arg0: i32) -> (i32, i32) {
    %c0_i32 = arith.constant 0 : i32
    %c0_i32_0 = arith.constant 0 : i32
    %c0_i32_1 = arith.constant 0 : i32
    return %c0_i32, %c0_i32_0 : i32, i32
  }
  func.func @transform_2(%arg0: i32) -> (i32, i32) {
    %c0_i32 = arith.constant 0 : i32
    %c0_i32_0 = arith.constant 0 : i32
    %c0_i32_1 = arith.constant 0 : i32
    return %c0_i32, %c0_i32_0 : i32, i32
  }
  func.func @transform_3(%arg0: i32) -> (i32, i32) {
    %c0_i32 = arith.constant 0 : i32
    %c0_i32_0 = arith.constant 0 : i32
    %c0_i32_1 = arith.constant 0 : i32
    return %c0_i32, %c0_i32_0 : i32, i32
  }
  func.func @transform_4(%arg0: i32) -> (i32, i32) {
    %c0_i32 = arith.constant 0 : i32
    %c0_i32_0 = arith.constant 0 : i32
    %c0_i32_1 = arith.constant 0 : i32
    return %c0_i32, %c0_i32_0 : i32, i32
  }
  func.func @transform_5(%arg0: i32) -> (i32, i32) {
    %c0_i32 = arith.constant 0 : i32
    %c0_i32_0 = arith.constant 0 : i32
    %c0_i32_1 = arith.constant 0 : i32
    return %c0_i32, %c0_i32_0 : i32, i32
  }
  func.func @transform_6(%arg0: i32) -> i32 {
    %c0_i32 = arith.constant 0 : i32
    %c0_i32_0 = arith.constant 0 : i32
    return %c0_i32 : i32
  }
  func.func @transform_7(%arg0: i32) -> (i32, i32) {
    %c0_i32 = arith.constant 0 : i32
    %c0_i32_0 = arith.constant 0 : i32
    return %c0_i32, %arg0 : i32, i32
  }
}

</mosaic_0001>

<llo_original>
// kernel: discriminator_forward.1
$region0: #{discriminator_forward.1}
  #allocation0 [shape = 'u32[]', space=smem, size = 0x4, offset = 0x4, fixed_abs, tag = 'smem constant byte address 0x4 - core index']
  #allocation1 [shape = 'u32[144,128]{1,0:T(1,128)}', space=vmem, size = 0x12000, scoped, tag = 'internal scratch']
  #allocation2 [shape = 'f32[1]{0:T(128)S(6)}', space=smem, size = 0x200, scoped, tag = 'scoped memory for discriminator_forward.1']
  %s0 = inlined_call_operand.hbm [shape: f32[8,256], index: 0, kind: input, shape index: {}]
  %s1 = inlined_call_operand.hbm [shape: bf16[256,512], index: 1, kind: input, shape index: {}]
  %s2 = inlined_call_operand.vmem [shape: f32[1,512], index: 2, kind: input, shape index: {}]
  %s3 = inlined_call_operand.hbm [shape: bf16[512,512], index: 3, kind: input, shape index: {}]
  %s4 = inlined_call_operand.vmem [shape: f32[1,512], index: 4, kind: input, shape index: {}]
  %s5 = inlined_call_operand.vmem [shape: bf16[1,512], index: 5, kind: input, shape index: {}]
  %s6 = inlined_call_operand.<no memory space> [shape: f32[1], index: 6, kind: input, shape index: {}]
  %s7 = inlined_call_operand.hbm [shape: f32[1,8], index: 7, kind: output, shape index: {}]
  %s8 = sld [smem:[#allocation0]]
  $region50: #{discriminator_forward.1} parent=0
    _
  %s10 = ssub.s32 1, %s8
  %s11 = scalar_select 0, %s10, %s8
  %12 = sst [smem:[#allocation2]] %s6
  $region1: #{discriminator_forward.1} parent=0
    #allocation3 [shape = 'u8[8192]{0}', space=vmem, size = 0x2000, scoped, tag = 'input window, operand 0, single buffered']
    #allocation4 [shape = 's32[1]{0}', space=sflag, size = 0x4, scoped, tag = 'scoped memory for discriminator_forward.1']
    #allocation5 [shape = 's32[1]{0}', space=sflag, size = 0x4, scoped, tag = 'scoped memory for discriminator_forward.1']
    #allocation6 [shape = 'u8[262144]{0}', space=vmem, size = 0x40000, scoped, tag = 'input window, operand 1, single buffered']
    #allocation7 [shape = 's32[1]{0}', space=sflag, size = 0x4, scoped, tag = 'scoped memory for discriminator_forward.1']
    #allocation8 [shape = 'u8[524288]{0}', space=vmem, size = 0x80000, scoped, tag = 'input window, operand 3, single buffered']
    #allocation9 [shape = 'u8[512]{0}', space=vmem, size = 0x400, scoped, tag = 'output window, operand 0, single buffered']
    %13 = vsyncpa [#allocation4], 0
    %14 = vsyncpa [#allocation7], 0
    %15 = vsyncpa [#allocation5], 0
    // Predicated region
    $region2: #{discriminator_forward.1} parent=1 // pred_check
      _
    $region3: #{discriminator_forward.1} parent=1 // pred_check_branch
      %17 = sbr.rel (0) target = $region5
    $region4: #{discriminator_forward.1} parent=1 // pred_region
      %s19 = ssub.s32 256, 256
      %20 = vsyncadd [#allocation4], %s19
      %s22 = sshll.u32 [#allocation3], 4
      %s23 = int_to_ptr.vmem [resolvable:$true] %s22
      %25 = dma.hbm_to_vmem [thread:$0]  %s0, 256, %s23, [#allocation4]
    $region5: #{discriminator_forward.1} parent=1 // pred_fallthru
      _
    // Predicated region
    $region6: #{discriminator_forward.1} parent=1 // pred_check
      _
    $region7: #{discriminator_forward.1} parent=1 // pred_check_branch
      %27 = sbr.rel (0) target = $region9
    $region8: #{discriminator_forward.1} parent=1 // pred_region
      %s29 = ssub.s32 8192, 8192
      %30 = vsyncadd [#allocation7], %s29
      %s31 = sshll.u32 [#allocation6], 4
      %s32 = int_to_ptr.vmem [resolvable:$true] %s31
      %37 = dma.hbm_to_vmem [thread:$0]  %s1, 8192, %s32, [#allocation7], 256, 256, 16
    $region9: #{discriminator_forward.1} parent=1 // pred_fallthru
      _
    // Predicated region
    $region10: #{discriminator_forward.1} parent=1 // pred_check
      _
    $region11: #{discriminator_forward.1} parent=1 // pred_check_branch
      %39 = sbr.rel (0) target = $region13
    $region12: #{discriminator_forward.1} parent=1 // pred_region
      _
    $region13: #{discriminator_forward.1} parent=1 // pred_fallthru
      _
    // Predicated region
    $region14: #{discriminator_forward.1} parent=1 // pred_check
      _
    $region15: #{discriminator_forward.1} parent=1 // pred_check_branch
      %41 = sbr.rel (0) target = $region17
    $region16: #{discriminator_forward.1} parent=1 // pred_region
      %s43 = ssub.s32 16384, 16384
      %44 = vsyncadd [#allocation7], %s43
      %s45 = sshll.u32 [#allocation8], 4
      %s46 = int_to_ptr.vmem [resolvable:$true] %s45
      %51 = dma.hbm_to_vmem [thread:$0]  %s3, 16384, %s46, [#allocation7], 256, 256, 16
    $region17: #{discriminator_forward.1} parent=1 // pred_fallthru
      _
    // Predicated region
    $region18: #{discriminator_forward.1} parent=1 // pred_check
      _
    $region19: #{discriminator_forward.1} parent=1 // pred_check_branch
      %53 = sbr.rel (0) target = $region21
    $region20: #{discriminator_forward.1} parent=1 // pred_region
      _
    $region21: #{discriminator_forward.1} parent=1 // pred_fallthru
      _
    // Predicated region
    $region22: #{discriminator_forward.1} parent=1 // pred_check
      _
    $region23: #{discriminator_forward.1} parent=1 // pred_check_branch
      %55 = sbr.rel (0) target = $region25
    $region24: #{discriminator_forward.1} parent=1 // pred_region
      _
    $region25: #{discriminator_forward.1} parent=1 // pred_fallthru
      _
    // Predicated region
    $region26: #{discriminator_forward.1} parent=1 // pred_check
      _
    $region27: #{discriminator_forward.1} parent=1 // pred_check_branch
      %57 = sbr.rel (0) target = $region29
    $region28: #{discriminator_forward.1} parent=1 // pred_region
      _
    $region29: #{discriminator_forward.1} parent=1 // pred_fallthru
      _
    // Predicated region
    $region30: #{discriminator_forward.1} parent=1 // pred_check
      _
    $region31: #{discriminator_forward.1} parent=1 // pred_check_branch
      %59 = sbr.rel (0) target = $region33
    $region32: #{discriminator_forward.1} parent=1 // pred_region
      %60 = dma.done [#allocation4], 256
    $region33: #{discriminator_forward.1} parent=1 // pred_fallthru
      _
    // Predicated region
    $region34: #{discriminator_forward.1} parent=1 // pred_check
      _
    $region35: #{discriminator_forward.1} parent=1 // pred_check_branch
      %62 = sbr.rel (0) target = $region37
    $region36: #{discriminator_forward.1} parent=1 // pred_region
      %63 = dma.done [#allocation7], 8192
    $region37: #{discriminator_forward.1} parent=1 // pred_fallthru
      _
    // Predicated region
    $region38: #{discriminator_forward.1} parent=1 // pred_check
      _
    $region39: #{discriminator_forward.1} parent=1 // pred_check_branch
      %65 = sbr.rel (0) target = $region41
    $region40: #{discriminator_forward.1} parent=1 // pred_region
      %66 = dma.done [#allocation7], 16384
    $region41: #{discriminator_forward.1} parent=1 // pred_fallthru
      _
    %v68 = vld [vmem:[#allocation3] sm:$0xff]
    %v69 = vld [vmem:[#allocation3 + $0x8] sm:$0xff]
    %v70 = vpack.c.bf16 %v68, %v68
    %v71 = vpack.c.bf16 %v69, %v69
    %v72 = vld [vmem:[#allocation6] sm:$0xff]
    %v73 = vld [vmem:[#allocation6 + $0x8] sm:$0xff]
    %v74 = vld [vmem:[#allocation6 + $0x10] sm:$0xff]
    %v75 = vld [vmem:[#allocation6 + $0x18] sm:$0xff]
    %v76 = vld [vmem:[#allocation6 + $0x20] sm:$0xff]
    %v77 = vld [vmem:[#allocation6 + $0x28] sm:$0xff]
    %v78 = vld [vmem:[#allocation6 + $0x30] sm:$0xff]
    %v79 = vld [vmem:[#allocation6 + $0x38] sm:$0xff]
    %v80 = vld [vmem:[#allocation6 + $0x40] sm:$0xff]
    %v81 = vld [vmem:[#allocation6 + $0x48] sm:$0xff]
    %v82 = vld [vmem:[#allocation6 + $0x50] sm:$0xff]
    %v83 = vld [vmem:[#allocation6 + $0x58] sm:$0xff]
    %v84 = vld [vmem:[#allocation6 + $0x60] sm:$0xff]
    %v85 = vld [vmem:[#allocation6 + $0x68] sm:$0xff]
    %v86 = vld [vmem:[#allocation6 + $0x70] sm:$0xff]
    %v87 = vld [vmem:[#allocation6 + $0x78] sm:$0xff]
    %v88 = vld [vmem:[#allocation6 + $0x80] sm:$0xff]
    %v89 = vld [vmem:[#allocation6 + $0x88] sm:$0xff]
    %v90 = vld [vmem:[#allocation6 + $0x90] sm:$0xff]
    %v91 = vld [vmem:[#allocation6 + $0x98] sm:$0xff]
    %v92 = vld [vmem:[#allocation6 + $0xa0] sm:$0xff]
    %v93 = vld [vmem:[#allocation6 + $0xa8] sm:$0xff]
    %v94 = vld [vmem:[#allocation6 + $0xb0] sm:$0xff]
    %v95 = vld [vmem:[#allocation6 + $0xb8] sm:$0xff]
    %v96 = vld [vmem:[#allocation6 + $0xc0] sm:$0xff]
    %v97 = vld [vmem:[#allocation6 + $0xc8] sm:$0xff]
    %v98 = vld [vmem:[#allocation6 + $0xd0] sm:$0xff]
    %v99 = vld [vmem:[#allocation6 + $0xd8] sm:$0xff]
    %v100 = vld [vmem:[#allocation6 + $0xe0] sm:$0xff]
    %v101 = vld [vmem:[#allocation6 + $0xe8] sm:$0xff]
    %v102 = vld [vmem:[#allocation6 + $0xf0] sm:$0xff]
    %v103 = vld [vmem:[#allocation6 + $0xf8] sm:$0xff]
    %v104 = vld [vmem:[#allocation6 + $0x100] sm:$0xff]
    %v105 = vld [vmem:[#allocation6 + $0x108] sm:$0xff]
    %v106 = vld [vmem:[#allocation6 + $0x110] sm:$0xff]
    %v107 = vld [vmem:[#allocation6 + $0x118] sm:$0xff]
    %v108 = vld [vmem:[#allocation6 + $0x120] sm:$0xff]
    %v109 = vld [vmem:[#allocation6 + $0x128] sm:$0xff]
    %v110 = vld [vmem:[#allocation6 + $0x130] sm:$0xff]
    %v111 = vld [vmem:[#allocation6 + $0x138] sm:$0xff]
    %v112 = vld [vmem:[#allocation6 + $0x140] sm:$0xff]
    %v113 = vld [vmem:[#allocation6 + $0x148] sm:$0xff]
    %v114 = vld [vmem:[#allocation6 + $0x150] sm:$0xff]
    %v115 = vld [vmem:[#allocation6 + $0x158] sm:$0xff]
    %v116 = vld [vmem:[#allocation6 + $0x160] sm:$0xff]
    %v117 = vld [vmem:[#allocation6 + $0x168] sm:$0xff]
    %v118 = vld [vmem:[#allocation6 + $0x170] sm:$0xff]
    %v119 = vld [vmem:[#allocation6 + $0x178] sm:$0xff]
    %v120 = vld [vmem:[#allocation6 + $0x180] sm:$0xff]
    %v121 = vld [vmem:[#allocation6 + $0x188] sm:$0xff]
    %v122 = vld [vmem:[#allocation6 + $0x190] sm:$0xff]
    %v123 = vld [vmem:[#allocation6 + $0x198] sm:$0xff]
    %v124 = vld [vmem:[#allocation6 + $0x1a0] sm:$0xff]
    %v125 = vld [vmem:[#allocation6 + $0x1a8] sm:$0xff]
    %v126 = vld [vmem:[#allocation6 + $0x1b0] sm:$0xff]
    %v127 = vld [vmem:[#allocation6 + $0x1b8] sm:$0xff]
    %v128 = vld [vmem:[#allocation6 + $0x1c0] sm:$0xff]
    %v129 = vld [vmem:[#allocation6 + $0x1c8] sm:$0xff]
    %v130 = vld [vmem:[#allocation6 + $0x1d0] sm:$0xff]
    %v131 = vld [vmem:[#allocation6 + $0x1d8] sm:$0xff]
    %v132 = vld [vmem:[#allocation6 + $0x1e0] sm:$0xff]
    %v133 = vld [vmem:[#allocation6 + $0x1e8] sm:$0xff]
    %v134 = vld [vmem:[#allocation6 + $0x1f0] sm:$0xff]
    %v135 = vld [vmem:[#allocation6 + $0x1f8] sm:$0xff]
    %v136 = vld [vmem:[%s2] sm:$0xf]
    %v138 = vlaneseq
    %v139 = vshrl.u32 %v138, 7
    %v140 = vsub.s32 0, %v139
    %v141 = vrot.slane %v136, %v140
    %v142 = vlaneseq
    %v143 = vshrl.u32 %v142, 7
    %v144 = vsub.s32 1, %v143
    %v145 = vrot.slane %v136, %v144
    %v146 = vlaneseq
    %v147 = vshrl.u32 %v146, 7
    %v148 = vsub.s32 2, %v147
    %v149 = vrot.slane %v136, %v148
    %v150 = vlaneseq
    %v151 = vshrl.u32 %v150, 7
    %v152 = vsub.s32 3, %v151
    %v153 = vrot.slane %v136, %v152
    %v222 = vunpack.c.l.b16 %v72
    %v223 = vunpack.c.h.b16 %v72
    %v224 = vunpack.c.l.b16 %v73
    %v225 = vunpack.c.h.b16 %v73
    %v226 = vunpack.c.l.b16 %v74
    %v227 = vunpack.c.h.b16 %v74
    %v228 = vunpack.c.l.b16 %v75
    %v229 = vunpack.c.h.b16 %v75
    %v230 = vunpack.c.l.b16 %v76
    %v231 = vunpack.c.h.b16 %v76
    %v232 = vunpack.c.l.b16 %v77
    %v233 = vunpack.c.h.b16 %v77
    %v234 = vunpack.c.l.b16 %v78
    %v235 = vunpack.c.h.b16 %v78
    %v236 = vunpack.c.l.b16 %v79
    %v237 = vunpack.c.h.b16 %v79
    %v238 = vunpack.c.l.b16 %v80
    %v239 = vunpack.c.h.b16 %v80
    %v240 = vunpack.c.l.b16 %v81
    %v241 = vunpack.c.h.b16 %v81
    %v242 = vunpack.c.l.b16 %v82
    %v243 = vunpack.c.h.b16 %v82
    %v244 = vunpack.c.l.b16 %v83
    %v245 = vunpack.c.h.b16 %v83
    %v246 = vunpack.c.l.b16 %v84
    %v247 = vunpack.c.h.b16 %v84
    %v248 = vunpack.c.l.b16 %v85
    %v249 = vunpack.c.h.b16 %v85
    %v250 = vunpack.c.l.b16 %v86
    %v251 = vunpack.c.h.b16 %v86
    %v252 = vunpack.c.l.b16 %v87
    %v253 = vunpack.c.h.b16 %v87
    %v254 = vunpack.c.l.b16 %v88
    %v255 = vunpack.c.h.b16 %v88
    %v256 = vunpack.c.l.b16 %v89
    %v257 = vunpack.c.h.b16 %v89
    %v258 = vunpack.c.l.b16 %v90
    %v259 = vunpack.c.h.b16 %v90
    %v260 = vunpack.c.l.b16 %v91
    %v261 = vunpack.c.h.b16 %v91
    %v262 = vunpack.c.l.b16 %v92
    %v263 = vunpack.c.h.b16 %v92
    %v264 = vunpack.c.l.b16 %v93
    %v265 = vunpack.c.h.b16 %v93
    %v266 = vunpack.c.l.b16 %v94
    %v267 = vunpack.c.h.b16 %v94
    %v268 = vunpack.c.l.b16 %v95
    %v269 = vunpack.c.h.b16 %v95
    %v270 = vunpack.c.l.b16 %v96
    %v271 = vunpack.c.h.b16 %v96
    %v272 = vunpack.c.l.b16 %v97
    %v273 = vunpack.c.h.b16 %v97
    %v274 = vunpack.c.l.b16 %v98
    %v275 = vunpack.c.h.b16 %v98
    %v276 = vunpack.c.l.b16 %v99
    %v277 = vunpack.c.h.b16 %v99
    %v278 = vunpack.c.l.b16 %v100
    %v279 = vunpack.c.h.b16 %v100
    %v280 = vunpack.c.l.b16 %v101
    %v281 = vunpack.c.h.b16 %v101
    %v282 = vunpack.c.l.b16 %v102
    %v283 = vunpack.c.h.b16 %v102
    %v284 = vunpack.c.l.b16 %v103
    %v285 = vunpack.c.h.b16 %v103
    %v286 = vunpack.c.l.b16 %v104
    %v287 = vunpack.c.h.b16 %v104
    %v288 = vunpack.c.l.b16 %v105
    %v289 = vunpack.c.h.b16 %v105
    %v290 = vunpack.c.l.b16 %v106
    %v291 = vunpack.c.h.b16 %v106
    %v292 = vunpack.c.l.b16 %v107
    %v293 = vunpack.c.h.b16 %v107
    %v294 = vunpack.c.l.b16 %v108
    %v295 = vunpack.c.h.b16 %v108
    %v296 = vunpack.c.l.b16 %v109
    %v297 = vunpack.c.h.b16 %v109
    %v298 = vunpack.c.l.b16 %v110
    %v299 = vunpack.c.h.b16 %v110
    %v300 = vunpack.c.l.b16 %v111
    %v301 = vunpack.c.h.b16 %v111
    %v302 = vunpack.c.l.b16 %v112
    %v303 = vunpack.c.h.b16 %v112
    %v304 = vunpack.c.l.b16 %v113
    %v305 = vunpack.c.h.b16 %v113
    %v306 = vunpack.c.l.b16 %v114
    %v307 = vunpack.c.h.b16 %v114
    %v308 = vunpack.c.l.b16 %v115
    %v309 = vunpack.c.h.b16 %v115
    %v310 = vunpack.c.l.b16 %v116
    %v311 = vunpack.c.h.b16 %v116
    %v312 = vunpack.c.l.b16 %v117
    %v313 = vunpack.c.h.b16 %v117
    %v314 = vunpack.c.l.b16 %v118
    %v315 = vunpack.c.h.b16 %v118
    %v316 = vunpack.c.l.b16 %v119
    %v317 = vunpack.c.h.b16 %v119
    %v318 = vunpack.c.l.b16 %v120
    %v319 = vunpack.c.h.b16 %v120
    %v320 = vunpack.c.l.b16 %v121
    %v321 = vunpack.c.h.b16 %v121
    %v322 = vunpack.c.l.b16 %v122
    %v323 = vunpack.c.h.b16 %v122
    %v324 = vunpack.c.l.b16 %v123
    %v325 = vunpack.c.h.b16 %v123
    %v326 = vunpack.c.l.b16 %v124
    %v327 = vunpack.c.h.b16 %v124
    %v328 = vunpack.c.l.b16 %v125
    %v329 = vunpack.c.h.b16 %v125
    %v330 = vunpack.c.l.b16 %v126
    %v331 = vunpack.c.h.b16 %v126
    %v332 = vunpack.c.l.b16 %v127
    %v333 = vunpack.c.h.b16 %v127
    %v334 = vunpack.c.l.b16 %v128
    %v335 = vunpack.c.h.b16 %v128
    %v336 = vunpack.c.l.b16 %v129
    %v337 = vunpack.c.h.b16 %v129
    %v338 = vunpack.c.l.b16 %v130
    %v339 = vunpack.c.h.b16 %v130
    %v340 = vunpack.c.l.b16 %v131
    %v341 = vunpack.c.h.b16 %v131
    %v342 = vunpack.c.l.b16 %v132
    %v343 = vunpack.c.h.b16 %v132
    %v344 = vunpack.c.l.b16 %v133
    %v345 = vunpack.c.h.b16 %v133
    %v346 = vunpack.c.l.b16 %v134
    %v347 = vunpack.c.h.b16 %v134
    %v348 = vunpack.c.l.b16 %v135
    %v349 = vunpack.c.h.b16 %v135
    %v350 = vpack.c.b16 %v226, %v222
    %v351 = vpack.c.b16 %v227, %v223
    %v352 = vpack.c.b16 %v228, %v224
    %v353 = vpack.c.b16 %v229, %v225
    %v354 = vpack.c.b16 %v234, %v230
    %v355 = vpack.c.b16 %v235, %v231
    %v356 = vpack.c.b16 %v236, %v232
    %v357 = vpack.c.b16 %v237, %v233
    %v358 = vpack.c.b16 %v242, %v238
    %v359 = vpack.c.b16 %v243, %v239
    %v360 = vpack.c.b16 %v244, %v240
    %v361 = vpack.c.b16 %v245, %v241
    %v362 = vpack.c.b16 %v250, %v246
    %v363 = vpack.c.b16 %v251, %v247
    %v364 = vpack.c.b16 %v252, %v248
    %v365 = vpack.c.b16 %v253, %v249
    %v366 = vpack.c.b16 %v258, %v254
    %v367 = vpack.c.b16 %v259, %v255
    %v368 = vpack.c.b16 %v260, %v256
    %v369 = vpack.c.b16 %v261, %v257
    %v370 = vpack.c.b16 %v266, %v262
    %v371 = vpack.c.b16 %v267, %v263
    %v372 = vpack.c.b16 %v268, %v264
    %v373 = vpack.c.b16 %v269, %v265
    %v374 = vpack.c.b16 %v274, %v270
    %v375 = vpack.c.b16 %v275, %v271
    %v376 = vpack.c.b16 %v276, %v272
    %v377 = vpack.c.b16 %v277, %v273
    %v378 = vpack.c.b16 %v282, %v278
    %v379 = vpack.c.b16 %v283, %v279
    %v380 = vpack.c.b16 %v284, %v280
    %v381 = vpack.c.b16 %v285, %v281
    %v382 = vpack.c.b16 %v290, %v286
    %v383 = vpack.c.b16 %v291, %v287
    %v384 = vpack.c.b16 %v292, %v288
    %v385 = vpack.c.b16 %v293, %v289
    %v386 = vpack.c.b16 %v298, %v294
    %v387 = vpack.c.b16 %v299, %v295
    %v388 = vpack.c.b16 %v300, %v296
    %v389 = vpack.c.b16 %v301, %v297
    %v390 = vpack.c.b16 %v306, %v302
    %v391 = vpack.c.b16 %v307, %v303
    %v392 = vpack.c.b16 %v308, %v304
    %v393 = vpack.c.b16 %v309, %v305
    %v394 = vpack.c.b16 %v314, %v310
    %v395 = vpack.c.b16 %v315, %v311
    %v396 = vpack.c.b16 %v316, %v312
    %v397 = vpack.c.b16 %v317, %v313
    %v398 = vpack.c.b16 %v322, %v318
    %v399 = vpack.c.b16 %v323, %v319
    %v400 = vpack.c.b16 %v324, %v320
    %v401 = vpack.c.b16 %v325, %v321
    %v402 = vpack.c.b16 %v330, %v326
    %v403 = vpack.c.b16 %v331, %v327
    %v404 = vpack.c.b16 %v332, %v328
    %v405 = vpack.c.b16 %v333, %v329
    %v406 = vpack.c.b16 %v338, %v334
    %v407 = vpack.c.b16 %v339, %v335
    %v408 = vpack.c.b16 %v340, %v336
    %v409 = vpack.c.b16 %v341, %v337
    %v410 = vpack.c.b16 %v346, %v342
    %v411 = vpack.c.b16 %v347, %v343
    %v412 = vpack.c.b16 %v348, %v344
    %v413 = vpack.c.b16 %v349, %v345
    %478 = vmatprep.subr.bf16.mxu0 %v351
    %479 = vmatpush1.bf16.msra.mxu0 %v350
    %480 = vmatprep.subr.bf16.mxu0 %v355
    %481 = vmatpush1.bf16.msra.mxu0 %v354
    %482 = vmatprep.subr.bf16.mxu0 %v359
    %483 = vmatpush1.bf16.msra.mxu0 %v358
    %484 = vmatprep.subr.bf16.mxu0 %v363
    %485 = vmatpush1.bf16.msra.mxu0 %v362
    %486 = vmatprep.subr.bf16.mxu0 %v367
    %487 = vmatpush1.bf16.msra.mxu0 %v366
    %488 = vmatprep.subr.bf16.mxu0 %v371
    %489 = vmatpush1.bf16.msra.mxu0 %v370
    %490 = vmatprep.subr.bf16.mxu0 %v375
    %491 = vmatpush1.bf16.msra.mxu0 %v374
    %492 = vmatprep.subr.bf16.mxu0 %v379
    %493 = vmatpush1.bf16.msra.mxu0 %v378
    %494 = vmatprep.subr.bf16.mxu0 %v383
    %495 = vmatpush1.bf16.msra.mxu0 %v382
    %496 = vmatprep.subr.bf16.mxu0 %v387
    %497 = vmatpush1.bf16.msra.mxu0 %v386
    %498 = vmatprep.subr.bf16.mxu0 %v391
    %499 = vmatpush1.bf16.msra.mxu0 %v390
    %500 = vmatprep.subr.bf16.mxu0 %v395
    %501 = vmatpush1.bf16.msra.mxu0 %v394
    %502 = vmatprep.subr.bf16.mxu0 %v399
    %503 = vmatpush1.bf16.msra.mxu0 %v398
    %504 = vmatprep.subr.bf16.mxu0 %v403
    %505 = vmatpush1.bf16.msra.mxu0 %v402
    %506 = vmatprep.subr.bf16.mxu0 %v407
    %507 = vmatpush1.bf16.msra.mxu0 %v406
    %508 = vmatprep.subr.bf16.mxu0 %v411
    %509 = vmatpush1.bf16.msra.mxu0 %v410
    %510 = vmatprep.mubr.bf16.mxu0 %v71
    %511 = vmatmul.mubr.bf16.gmra.mrb[0].mxu0 %v70
    %v512 = vpop.f32.mrb[0].mxu0
    %v513 = vadd.f32 %v141, %v512
    %v514 = vpop.f32.mrb[0].mxu0
    %v515 = vadd.f32 %v145, %v514
    %v516 = vpop.f32.mrb[0].mxu0
    %v517 = vpop.f32.mrb[0].mxu0
    %518 = vdwg.mxu0
    %519 = vmatprep.subr.bf16.mxu0 %v353
    %520 = vmatpush1.bf16.msra.mxu0 %v352
    %521 = vmatprep.subr.bf16.mxu0 %v357
    %522 = vmatpush1.bf16.msra.mxu0 %v356
    %523 = vmatprep.subr.bf16.mxu0 %v361
    %524 = vmatpush1.bf16.msra.mxu0 %v360
    %525 = vmatprep.subr.bf16.mxu0 %v365
    %526 = vmatpush1.bf16.msra.mxu0 %v364
    %527 = vmatprep.subr.bf16.mxu0 %v369
    %528 = vmatpush1.bf16.msra.mxu0 %v368
    %529 = vmatprep.subr.bf16.mxu0 %v373
    %530 = vmatpush1.bf16.msra.mxu0 %v372
    %531 = vmatprep.subr.bf16.mxu0 %v377
    %532 = vmatpush1.bf16.msra.mxu0 %v376
    %533 = vmatprep.subr.bf16.mxu0 %v381
    %534 = vmatpush1.bf16.msra.mxu0 %v380
    %535 = vmatprep.subr.bf16.mxu0 %v385
    %536 = vmatpush1.bf16.msra.mxu0 %v384
    %537 = vmatprep.subr.bf16.mxu0 %v389
    %538 = vmatpush1.bf16.msra.mxu0 %v388
    %539 = vmatprep.subr.bf16.mxu0 %v393
    %540 = vmatpush1.bf16.msra.mxu0 %v392
    %541 = vmatprep.subr.bf16.mxu0 %v397
    %542 = vmatpush1.bf16.msra.mxu0 %v396
    %543 = vmatprep.subr.bf16.mxu0 %v401
    %544 = vmatpush1.bf16.msra.mxu0 %v400
    %545 = vmatprep.subr.bf16.mxu0 %v405
    %546 = vmatpush1.bf16.msra.mxu0 %v404
    %547 = vmatprep.subr.bf16.mxu0 %v409
    %548 = vmatpush1.bf16.msra.mxu0 %v408
    %549 = vmatprep.subr.bf16.mxu0 %v413
    %550 = vmatpush1.bf16.msra.mxu0 %v412
    %551 = vmatprep.mubr.bf16.mxu0 %v71
    %552 = vmatmul.mubr.bf16.gmra.mrb[0].mxu0 %v70
    %v553 = vpop.f32.mrb[0].mxu0
    %v554 = vadd.f32 %v149, %v553
    %v555 = vpop.f32.mrb[0].mxu0
    %v556 = vadd.f32 %v153, %v555
    %v557 = vpop.f32.mrb[0].mxu0
    %v558 = vpop.f32.mrb[0].mxu0
    %559 = vdwg.mxu0
    %v560 = vmax.f32 %v513, 0.0
    %v561 = vmax.f32 %v515, 0.0
    %v562 = vmax.f32 %v554, 0.0
    %v563 = vmax.f32 %v556, 0.0
    %v564 = vpack.c.bf16 %v560, %v560
    %v565 = vpack.c.bf16 %v561, %v561
    %v566 = vpack.c.bf16 %v562, %v562
    %v567 = vpack.c.bf16 %v563, %v563
    %v568 = vld [vmem:[#allocation8] sm:$0xff]
    %v569 = vld [vmem:[#allocation8 + $0x8] sm:$0xff]
    %v570 = vld [vmem:[#allocation8 + $0x10] sm:$0xff]
    %v571 = vld [vmem:[#allocation8 + $0x18] sm:$0xff]
    %v572 = vld [vmem:[#allocation8 + $0x20] sm:$0xff]
    %v573 = vld [vmem:[#allocation8 + $0x28] sm:$0xff]
    %v574 = vld [vmem:[#allocation8 + $0x30] sm:$0xff]
    %v575 = vld [vmem:[#allocation8 + $0x38] sm:$0xff]
    %v576 = vld [vmem:[#allocation8 + $0x40] sm:$0xff]
    %v577 = vld [vmem:[#allocation8 + $0x48] sm:$0xff]
    %v578 = vld [vmem:[#allocation8 + $0x50] sm:$0xff]
    %v579 = vld [vmem:[#allocation8 + $0x58] sm:$0xff]
    %v580 = vld [vmem:[#allocation8 + $0x60] sm:$0xff]
    %v581 = vld [vmem:[#allocation8 + $0x68] sm:$0xff]
    %v582 = vld [vmem:[#allocation8 + $0x70] sm:$0xff]
    %v583 = vld [vmem:[#allocation8 + $0x78] sm:$0xff]
    %v584 = vld [vmem:[#allocation8 + $0x80] sm:$0xff]
    %v585 = vld [vmem:[#allocation8 + $0x88] sm:$0xff]
    %v586 = vld [vmem:[#allocation8 + $0x90] sm:$0xff]
    %v587 = vld [vmem:[#allocation8 + $0x98] sm:$0xff]
    %v588 = vld [vmem:[#allocation8 + $0xa0] sm:$0xff]
    %v589 = vld [vmem:[#allocation8 + $0xa8] sm:$0xff]
    %v590 = vld [vmem:[#allocation8 + $0xb0] sm:$0xff]
    %v591 = vld [vmem:[#allocation8 + $0xb8] sm:$0xff]
    %v592 = vld [vmem:[#allocation8 + $0xc0] sm:$0xff]
    %v593 = vld [vmem:[#allocation8 + $0xc8] sm:$0xff]
    %v594 = vld [vmem:[#allocation8 + $0xd0] sm:$0xff]
    %v595 = vld [vmem:[#allocation8 + $0xd8] sm:$0xff]
    %v596 = vld [vmem:[#allocation8 + $0xe0] sm:$0xff]
    %v597 = vld [vmem:[#allocation8 + $0xe8] sm:$0xff]
    %v598 = vld [vmem:[#allocation8 + $0xf0] sm:$0xff]
    %v599 = vld [vmem:[#allocation8 + $0xf8] sm:$0xff]
    %v600 = vld [vmem:[#allocation8 + $0x100] sm:$0xff]
    %v601 = vld [vmem:[#allocation8 + $0x108] sm:$0xff]
    %v602 = vld [vmem:[#allocation8 + $0x110] sm:$0xff]
    %v603 = vld [vmem:[#allocation8 + $0x118] sm:$0xff]
    %v604 = vld [vmem:[#allocation8 + $0x120] sm:$0xff]
    %v605 = vld [vmem:[#allocation8 + $0x128] sm:$0xff]
    %v606 = vld [vmem:[#allocation8 + $0x130] sm:$0xff]
    %v607 = vld [vmem:[#allocation8 + $0x138] sm:$0xff]
    %v608 = vld [vmem:[#allocation8 + $0x140] sm:$0xff]
    %v609 = vld [vmem:[#allocation8 + $0x148] sm:$0xff]
    %v610 = vld [vmem:[#allocation8 + $0x150] sm:$0xff]
    %v611 = vld [vmem:[#allocation8 + $0x158] sm:$0xff]
    %v612 = vld [vmem:[#allocation8 + $0x160] sm:$0xff]
    %v613 = vld [vmem:[#allocation8 + $0x168] sm:$0xff]
    %v614 = vld [vmem:[#allocation8 + $0x170] sm:$0xff]
    %v615 = vld [vmem:[#allocation8 + $0x178] sm:$0xff]
    %v616 = vld [vmem:[#allocation8 + $0x180] sm:$0xff]
    %v617 = vld [vmem:[#allocation8 + $0x188] sm:$0xff]
    %v618 = vld [vmem:[#allocation8 + $0x190] sm:$0xff]
    %v619 = vld [vmem:[#allocation8 + $0x198] sm:$0xff]
    %v620 = vld [vmem:[#allocation8 + $0x1a0] sm:$0xff]
    %v621 = vld [vmem:[#allocation8 + $0x1a8] sm:$0xff]
    %v622 = vld [vmem:[#allocation8 + $0x1b0] sm:$0xff]
    %v623 = vld [vmem:[#allocation8 + $0x1b8] sm:$0xff]
    %v624 = vld [vmem:[#allocation8 + $0x1c0] sm:$0xff]
    %v625 = vld [vmem:[#allocation8 + $0x1c8] sm:$0xff]
    %v626 = vld [vmem:[#allocation8 + $0x1d0] sm:$0xff]
    %v627 = vld [vmem:[#allocation8 + $0x1d8] sm:$0xff]
    %v628 = vld [vmem:[#allocation8 + $0x1e0] sm:$0xff]
    %v629 = vld [vmem:[#allocation8 + $0x1e8] sm:$0xff]
    %v630 = vld [vmem:[#allocation8 + $0x1f0] sm:$0xff]
    %v631 = vld [vmem:[#allocation8 + $0x1f8] sm:$0xff]
    %v632 = vld [vmem:[#allocation8 + $0x200] sm:$0xff]
    %v633 = vld [vmem:[#allocation8 + $0x208] sm:$0xff]
    %v634 = vld [vmem:[#allocation8 + $0x210] sm:$0xff]
    %v635 = vld [vmem:[#allocation8 + $0x218] sm:$0xff]
    %v636 = vld [vmem:[#allocation8 + $0x220] sm:$0xff]
    %v637 = vld [vmem:[#allocation8 + $0x228] sm:$0xff]
    %v638 = vld [vmem:[#allocation8 + $0x230] sm:$0xff]
    %v639 = vld [vmem:[#allocation8 + $0x238] sm:$0xff]
    %v640 = vld [vmem:[#allocation8 + $0x240] sm:$0xff]
    %v641 = vld [vmem:[#allocation8 + $0x248] sm:$0xff]
    %v642 = vld [vmem:[#allocation8 + $0x250] sm:$0xff]
    %v643 = vld [vmem:[#allocation8 + $0x258] sm:$0xff]
    %v644 = vld [vmem:[#allocation8 + $0x260] sm:$0xff]
    %v645 = vld [vmem:[#allocation8 + $0x268] sm:$0xff]
    %v646 = vld [vmem:[#allocation8 + $0x270] sm:$0xff]
    %v647 = vld [vmem:[#allocation8 + $0x278] sm:$0xff]
    %v648 = vld [vmem:[#allocation8 + $0x280] sm:$0xff]
    %v649 = vld [vmem:[#allocation8 + $0x288] sm:$0xff]
    %v650 = vld [vmem:[#allocation8 + $0x290] sm:$0xff]
    %v651 = vld [vmem:[#allocation8 + $0x298] sm:$0xff]
    %v652 = vld [vmem:[#allocation8 + $0x2a0] sm:$0xff]
    %v653 = vld [vmem:[#allocation8 + $0x2a8] sm:$0xff]
    %v654 = vld [vmem:[#allocation8 + $0x2b0] sm:$0xff]
    %v655 = vld [vmem:[#allocation8 + $0x2b8] sm:$0xff]
    %v656 = vld [vmem:[#allocation8 + $0x2c0] sm:$0xff]
    %v657 = vld [vmem:[#allocation8 + $0x2c8] sm:$0xff]
    %v658 = vld [vmem:[#allocation8 + $0x2d0] sm:$0xff]
    %v659 = vld [vmem:[#allocation8 + $0x2d8] sm:$0xff]
    %v660 = vld [vmem:[#allocation8 + $0x2e0] sm:$0xff]
    %v661 = vld [vmem:[#allocation8 + $0x2e8] sm:$0xff]
    %v662 = vld [vmem:[#allocation8 + $0x2f0] sm:$0xff]
    %v663 = vld [vmem:[#allocation8 + $0x2f8] sm:$0xff]
    %v664 = vld [vmem:[#allocation8 + $0x300] sm:$0xff]
    %v665 = vld [vmem:[#allocation8 + $0x308] sm:$0xff]
    %v666 = vld [vmem:[#allocation8 + $0x310] sm:$0xff]
    %v667 = vld [vmem:[#allocation8 + $0x318] sm:$0xff]
    %v668 = vld [vmem:[#allocation8 + $0x320] sm:$0xff]
    %v669 = vld [vmem:[#allocation8 + $0x328] sm:$0xff]
    %v670 = vld [vmem:[#allocation8 + $0x330] sm:$0xff]
    %v671 = vld [vmem:[#allocation8 + $0x338] sm:$0xff]
    %v672 = vld [vmem:[#allocation8 + $0x340] sm:$0xff]
    %v673 = vld [vmem:[#allocation8 + $0x348] sm:$0xff]
    %v674 = vld [vmem:[#allocation8 + $0x350] sm:$0xff]
    %v675 = vld [vmem:[#allocation8 + $0x358] sm:$0xff]
    %v676 = vld [vmem:[#allocation8 + $0x360] sm:$0xff]
    %v677 = vld [vmem:[#allocation8 + $0x368] sm:$0xff]
    %v678 = vld [vmem:[#allocation8 + $0x370] sm:$0xff]
    %v679 = vld [vmem:[#allocation8 + $0x378] sm:$0xff]
    %v680 = vld [vmem:[#allocation8 + $0x380] sm:$0xff]
    %v681 = vld [vmem:[#allocation8 + $0x388] sm:$0xff]
    %v682 = vld [vmem:[#allocation8 + $0x390] sm:$0xff]
    %v683 = vld [vmem:[#allocation8 + $0x398] sm:$0xff]
    %v684 = vld [vmem:[#allocation8 + $0x3a0] sm:$0xff]
    %v685 = vld [vmem:[#allocation8 + $0x3a8] sm:$0xff]
    %v686 = vld [vmem:[#allocation8 + $0x3b0] sm:$0xff]
    %v687 = vld [vmem:[#allocation8 + $0x3b8] sm:$0xff]
    %v688 = vld [vmem:[#allocation8 + $0x3c0] sm:$0xff]
    %v689 = vld [vmem:[#allocation8 + $0x3c8] sm:$0xff]
    %v690 = vld [vmem:[#allocation8 + $0x3d0] sm:$0xff]
    %v691 = vld [vmem:[#allocation8 + $0x3d8] sm:$0xff]
    %v692 = vld [vmem:[#allocation8 + $0x3e0] sm:$0xff]
    %v693 = vld [vmem:[#allocation8 + $0x3e8] sm:$0xff]
    %v694 = vld [vmem:[#allocation8 + $0x3f0] sm:$0xff]
    %v695 = vld [vmem:[#allocation8 + $0x3f8] sm:$0xff]
    %v696 = vld [vmem:[%s4] sm:$0xf]
    %v698 = vlaneseq
    %v699 = vshrl.u32 %v698, 7
    %v700 = vsub.s32 0, %v699
    %v701 = vrot.slane %v696, %v700
    %v702 = vlaneseq
    %v703 = vshrl.u32 %v702, 7
    %v704 = vsub.s32 1, %v703
    %v705 = vrot.slane %v696, %v704
    %v706 = vlaneseq
    %v707 = vshrl.u32 %v706, 7
    %v708 = vsub.s32 2, %v707
    %v709 = vrot.slane %v696, %v708
    %v710 = vlaneseq
    %v711 = vshrl.u32 %v710, 7
    %v712 = vsub.s32 3, %v711
    %v713 = vrot.slane %v696, %v712
    %v846 = vunpack.c.l.b16 %v568
    %v847 = vunpack.c.h.b16 %v568
    %v848 = vunpack.c.l.b16 %v569
    %v849 = vunpack.c.h.b16 %v569
    %v850 = vunpack.c.l.b16 %v570
    %v851 = vunpack.c.h.b16 %v570
    %v852 = vunpack.c.l.b16 %v571
    %v853 = vunpack.c.h.b16 %v571
    %v854 = vunpack.c.l.b16 %v572
    %v855 = vunpack.c.h.b16 %v572
    %v856 = vunpack.c.l.b16 %v573
    %v857 = vunpack.c.h.b16 %v573
    %v858 = vunpack.c.l.b16 %v574
    %v859 = vunpack.c.h.b16 %v574
    %v860 = vunpack.c.l.b16 %v575
    %v861 = vunpack.c.h.b16 %v575
    %v862 = vunpack.c.l.b16 %v576
    %v863 = vunpack.c.h.b16 %v576
    %v864 = vunpack.c.l.b16 %v577
    %v865 = vunpack.c.h.b16 %v577
    %v866 = vunpack.c.l.b16 %v578
    %v867 = vunpack.c.h.b16 %v578
    %v868 = vunpack.c.l.b16 %v579
    %v869 = vunpack.c.h.b16 %v579
    %v870 = vunpack.c.l.b16 %v580
    %v871 = vunpack.c.h.b16 %v580
    %v872 = vunpack.c.l.b16 %v581
    %v873 = vunpack.c.h.b16 %v581
    %v874 = vunpack.c.l.b16 %v582
    %v875 = vunpack.c.h.b16 %v582
    %v876 = vunpack.c.l.b16 %v583
    %v877 = vunpack.c.h.b16 %v583
    %v878 = vunpack.c.l.b16 %v584
    %v879 = vunpack.c.h.b16 %v584
    %v880 = vunpack.c.l.b16 %v585
    %v881 = vunpack.c.h.b16 %v585
    %v882 = vunpack.c.l.b16 %v586
    %v883 = vunpack.c.h.b16 %v586
    %v884 = vunpack.c.l.b16 %v587
    %v885 = vunpack.c.h.b16 %v587
    %v886 = vunpack.c.l.b16 %v588
    %v887 = vunpack.c.h.b16 %v588
    %v888 = vunpack.c.l.b16 %v589
    %v889 = vunpack.c.h.b16 %v589
    %v890 = vunpack.c.l.b16 %v590
    %v891 = vunpack.c.h.b16 %v590
    %v892 = vunpack.c.l.b16 %v591
    %v893 = vunpack.c.h.b16 %v591
    %v894 = vunpack.c.l.b16 %v592
    %v895 = vunpack.c.h.b16 %v592
    %v896 = vunpack.c.l.b16 %v593
    %v897 = vunpack.c.h.b16 %v593
    %v898 = vunpack.c.l.b16 %v594
    %v899 = vunpack.c.h.b16 %v594
    %v900 = vunpack.c.l.b16 %v595
    %v901 = vunpack.c.h.b16 %v595
    %v902 = vunpack.c.l.b16 %v596
    %v903 = vunpack.c.h.b16 %v596
    %v904 = vunpack.c.l.b16 %v597
    %v905 = vunpack.c.h.b16 %v597
    %v906 = vunpack.c.l.b16 %v598
    %v907 = vunpack.c.h.b16 %v598
    %v908 = vunpack.c.l.b16 %v599
    %v909 = vunpack.c.h.b16 %v599
    %v910 = vunpack.c.l.b16 %v600
    %v911 = vunpack.c.h.b16 %v600
    %v912 = vunpack.c.l.b16 %v601
    %v913 = vunpack.c.h.b16 %v601
    %v914 = vunpack.c.l.b16 %v602
    %v915 = vunpack.c.h.b16 %v602
    %v916 = vunpack.c.l.b16 %v603
    %v917 = vunpack.c.h.b16 %v603
    %v918 = vunpack.c.l.b16 %v604
    %v919 = vunpack.c.h.b16 %v604
    %v920 = vunpack.c.l.b16 %v605
    %v921 = vunpack.c.h.b16 %v605
    %v922 = vunpack.c.l.b16 %v606
    %v923 = vunpack.c.h.b16 %v606
    %v924 = vunpack.c.l.b16 %v607
    %v925 = vunpack.c.h.b16 %v607
    %v926 = vunpack.c.l.b16 %v608
    %v927 = vunpack.c.h.b16 %v608
    %v928 = vunpack.c.l.b16 %v609
    %v929 = vunpack.c.h.b16 %v609
    %v930 = vunpack.c.l.b16 %v610
    %v931 = vunpack.c.h.b16 %v610
    %v932 = vunpack.c.l.b16 %v611
    %v933 = vunpack.c.h.b16 %v611
    %v934 = vunpack.c.l.b16 %v612
    %v935 = vunpack.c.h.b16 %v612
    %v936 = vunpack.c.l.b16 %v613
    %v937 = vunpack.c.h.b16 %v613
    %v938 = vunpack.c.l.b16 %v614
    %v939 = vunpack.c.h.b16 %v614
    %v940 = vunpack.c.l.b16 %v615
    %v941 = vunpack.c.h.b16 %v615
    %v942 = vunpack.c.l.b16 %v616
    %v943 = vunpack.c.h.b16 %v616
    %v944 = vunpack.c.l.b16 %v617
    %v945 = vunpack.c.h.b16 %v617
    %v946 = vunpack.c.l.b16 %v618
    %v947 = vunpack.c.h.b16 %v618
    %v948 = vunpack.c.l.b16 %v619
    %v949 = vunpack.c.h.b16 %v619
    %v950 = vunpack.c.l.b16 %v620
    %v951 = vunpack.c.h.b16 %v620
    %v952 = vunpack.c.l.b16 %v621
    %v953 = vunpack.c.h.b16 %v621
    %v954 = vunpack.c.l.b16 %v622
    %v955 = vunpack.c.h.b16 %v622
    %v956 = vunpack.c.l.b16 %v623
    %v957 = vunpack.c.h.b16 %v623
    %v958 = vunpack.c.l.b16 %v624
    %v959 = vunpack.c.h.b16 %v624
    %v960 = vunpack.c.l.b16 %v625
    %v961 = vunpack.c.h.b16 %v625
    %v962 = vunpack.c.l.b16 %v626
    %v963 = vunpack.c.h.b16 %v626
    %v964 = vunpack.c.l.b16 %v627
    %v965 = vunpack.c.h.b16 %v627
    %v966 = vunpack.c.l.b16 %v628
    %v967 = vunpack.c.h.b16 %v628
    %v968 = vunpack.c.l.b16 %v629
    %v969 = vunpack.c.h.b16 %v629
    %v970 = vunpack.c.l.b16 %v630
    %v971 = vunpack.c.h.b16 %v630
    %v972 = vunpack.c.l.b16 %v631
    %v973 = vunpack.c.h.b16 %v631
    %v974 = vunpack.c.l.b16 %v632
    %v975 = vunpack.c.h.b16 %v632
    %v976 = vunpack.c.l.b16 %v633
    %v977 = vunpack.c.h.b16 %v633
    %v978 = vunpack.c.l.b16 %v634
    %v979 = vunpack.c.h.b16 %v634
    %v980 = vunpack.c.l.b16 %v635
    %v981 = vunpack.c.h.b16 %v635
    %v982 = vunpack.c.l.b16 %v636
    %v983 = vunpack.c.h.b16 %v636
    %v984 = vunpack.c.l.b16 %v637
    %v985 = vunpack.c.h.b16 %v637
    %v986 = vunpack.c.l.b16 %v638
    %v987 = vunpack.c.h.b16 %v638
    %v988 = vunpack.c.l.b16 %v639
    %v989 = vunpack.c.h.b16 %v639
    %v990 = vunpack.c.l.b16 %v640
    %v991 = vunpack.c.h.b16 %v640
    %v992 = vunpack.c.l.b16 %v641
    %v993 = vunpack.c.h.b16 %v641
    %v994 = vunpack.c.l.b16 %v642
    %v995 = vunpack.c.h.b16 %v642
    %v996 = vunpack.c.l.b16 %v643
    %v997 = vunpack.c.h.b16 %v643
    %v998 = vunpack.c.l.b16 %v644
    %v999 = vunpack.c.h.b16 %v644
    %v1000 = vunpack.c.l.b16 %v645
    %v1001 = vunpack.c.h.b16 %v645
    %v1002 = vunpack.c.l.b16 %v646
    %v1003 = vunpack.c.h.b16 %v646
    %v1004 = vunpack.c.l.b16 %v647
    %v1005 = vunpack.c.h.b16 %v647
    %v1006 = vunpack.c.l.b16 %v648
    %v1007 = vunpack.c.h.b16 %v648
    %v1008 = vunpack.c.l.b16 %v649
    %v1009 = vunpack.c.h.b16 %v649
    %v1010 = vunpack.c.l.b16 %v650
    %v1011 = vunpack.c.h.b16 %v650
    %v1012 = vunpack.c.l.b16 %v651
    %v1013 = vunpack.c.h.b16 %v651
    %v1014 = vunpack.c.l.b16 %v652
    %v1015 = vunpack.c.h.b16 %v652
    %v1016 = vunpack.c.l.b16 %v653
    %v1017 = vunpack.c.h.b16 %v653
    %v1018 = vunpack.c.l.b16 %v654
    %v1019 = vunpack.c.h.b16 %v654
    %v1020 = vunpack.c.l.b16 %v655
    %v1021 = vunpack.c.h.b16 %v655
    %v1022 = vunpack.c.l.b16 %v656
    %v1023 = vunpack.c.h.b16 %v656
    %v1024 = vunpack.c.l.b16 %v657
    %v1025 = vunpack.c.h.b16 %v657
    %v1026 = vunpack.c.l.b16 %v658
    %v1027 = vunpack.c.h.b16 %v658
    %v1028 = vunpack.c.l.b16 %v659
    %v1029 = vunpack.c.h.b16 %v659
    %v1030 = vunpack.c.l.b16 %v660
    %v1031 = vunpack.c.h.b16 %v660
    %v1032 = vunpack.c.l.b16 %v661
    %v1033 = vunpack.c.h.b16 %v661
    %v1034 = vunpack.c.l.b16 %v662
    %v1035 = vunpack.c.h.b16 %v662
    %v1036 = vunpack.c.l.b16 %v663
    %v1037 = vunpack.c.h.b16 %v663
    %v1038 = vunpack.c.l.b16 %v664
    %v1039 = vunpack.c.h.b16 %v664
    %v1040 = vunpack.c.l.b16 %v665
    %v1041 = vunpack.c.h.b16 %v665
    %v1042 = vunpack.c.l.b16 %v666
    %v1043 = vunpack.c.h.b16 %v666
    %v1044 = vunpack.c.l.b16 %v667
    %v1045 = vunpack.c.h.b16 %v667
    %v1046 = vunpack.c.l.b16 %v668
    %v1047 = vunpack.c.h.b16 %v668
    %v1048 = vunpack.c.l.b16 %v669
    %v1049 = vunpack.c.h.b16 %v669
    %v1050 = vunpack.c.l.b16 %v670
    %v1051 = vunpack.c.h.b16 %v670
    %v1052 = vunpack.c.l.b16 %v671
    %v1053 = vunpack.c.h.b16 %v671
    %v1054 = vunpack.c.l.b16 %v672
    %v1055 = vunpack.c.h.b16 %v672
    %v1056 = vunpack.c.l.b16 %v673
    %v1057 = vunpack.c.h.b16 %v673
    %v1058 = vunpack.c.l.b16 %v674
    %v1059 = vunpack.c.h.b16 %v674
    %v1060 = vunpack.c.l.b16 %v675
    %v1061 = vunpack.c.h.b16 %v675
    %v1062 = vunpack.c.l.b16 %v676
    %v1063 = vunpack.c.h.b16 %v676
    %v1064 = vunpack.c.l.b16 %v677
    %v1065 = vunpack.c.h.b16 %v677
    %v1066 = vunpack.c.l.b16 %v678
    %v1067 = vunpack.c.h.b16 %v678
    %v1068 = vunpack.c.l.b16 %v679
    %v1069 = vunpack.c.h.b16 %v679
    %v1070 = vunpack.c.l.b16 %v680
    %v1071 = vunpack.c.h.b16 %v680
    %v1072 = vunpack.c.l.b16 %v681
    %v1073 = vunpack.c.h.b16 %v681
    %v1074 = vunpack.c.l.b16 %v682
    %v1075 = vunpack.c.h.b16 %v682
    %v1076 = vunpack.c.l.b16 %v683
    %v1077 = vunpack.c.h.b16 %v683
    %v1078 = vunpack.c.l.b16 %v684
    %v1079 = vunpack.c.h.b16 %v684
    %v1080 = vunpack.c.l.b16 %v685
    %v1081 = vunpack.c.h.b16 %v685
    %v1082 = vunpack.c.l.b16 %v686
    %v1083 = vunpack.c.h.b16 %v686
    %v1084 = vunpack.c.l.b16 %v687
    %v1085 = vunpack.c.h.b16 %v687
    %v1086 = vunpack.c.l.b16 %v688
    %v1087 = vunpack.c.h.b16 %v688
    %v1088 = vunpack.c.l.b16 %v689
    %v1089 = vunpack.c.h.b16 %v689
    %v1090 = vunpack.c.l.b16 %v690
    %v1091 = vunpack.c.h.b16 %v690
    %v1092 = vunpack.c.l.b16 %v691
    %v1093 = vunpack.c.h.b16 %v691
    %v1094 = vunpack.c.l.b16 %v692
    %v1095 = vunpack.c.h.b16 %v692
    %v1096 = vunpack.c.l.b16 %v693
    %v1097 = vunpack.c.h.b16 %v693
    %v1098 = vunpack.c.l.b16 %v694
    %v1099 = vunpack.c.h.b16 %v694
    %v1100 = vunpack.c.l.b16 %v695
    %v1101 = vunpack.c.h.b16 %v695
    %v1102 = vpack.c.b16 %v850, %v846
    %v1103 = vpack.c.b16 %v851, %v847
    %v1104 = vpack.c.b16 %v852, %v848
    %v1105 = vpack.c.b16 %v853, %v849
    %v1106 = vpack.c.b16 %v858, %v854
    %v1107 = vpack.c.b16 %v859, %v855
    %v1108 = vpack.c.b16 %v860, %v856
    %v1109 = vpack.c.b16 %v861, %v857
    %v1110 = vpack.c.b16 %v866, %v862
    %v1111 = vpack.c.b16 %v867, %v863
    %v1112 = vpack.c.b16 %v868, %v864
    %v1113 = vpack.c.b16 %v869, %v865
    %v1114 = vpack.c.b16 %v874, %v870
    %v1115 = vpack.c.b16 %v875, %v871
    %v1116 = vpack.c.b16 %v876, %v872
    %v1117 = vpack.c.b16 %v877, %v873
    %v1118 = vpack.c.b16 %v882, %v878
    %v1119 = vpack.c.b16 %v883, %v879
    %v1120 = vpack.c.b16 %v884, %v880
    %v1121 = vpack.c.b16 %v885, %v881
    %v1122 = vpack.c.b16 %v890, %v886
    %v1123 = vpack.c.b16 %v891, %v887
    %v1124 = vpack.c.b16 %v892, %v888
    %v1125 = vpack.c.b16 %v893, %v889
    %v1126 = vpack.c.b16 %v898, %v894
    %v1127 = vpack.c.b16 %v899, %v895
    %v1128 = vpack.c.b16 %v900, %v896
    %v1129 = vpack.c.b16 %v901, %v897
    %v1130 = vpack.c.b16 %v906, %v902
    %v1131 = vpack.c.b16 %v907, %v903
    %v1132 = vpack.c.b16 %v908, %v904
    %v1133 = vpack.c.b16 %v909, %v905
    %v1134 = vpack.c.b16 %v914, %v910
    %v1135 = vpack.c.b16 %v915, %v911
    %v1136 = vpack.c.b16 %v916, %v912
    %v1137 = vpack.c.b16 %v917, %v913
    %v1138 = vpack.c.b16 %v922, %v918
    %v1139 = vpack.c.b16 %v923, %v919
    %v1140 = vpack.c.b16 %v924, %v920
    %v1141 = vpack.c.b16 %v925, %v921
    %v1142 = vpack.c.b16 %v930, %v926
    %v1143 = vpack.c.b16 %v931, %v927
    %v1144 = vpack.c.b16 %v932, %v928
    %v1145 = vpack.c.b16 %v933, %v929
    %v1146 = vpack.c.b16 %v938, %v934
    %v1147 = vpack.c.b16 %v939, %v935
    %v1148 = vpack.c.b16 %v940, %v936
    %v1149 = vpack.c.b16 %v941, %v937
    %v1150 = vpack.c.b16 %v946, %v942
    %v1151 = vpack.c.b16 %v947, %v943
    %v1152 = vpack.c.b16 %v948, %v944
    %v1153 = vpack.c.b16 %v949, %v945
    %v1154 = vpack.c.b16 %v954, %v950
    %v1155 = vpack.c.b16 %v955, %v951
    %v1156 = vpack.c.b16 %v956, %v952
    %v1157 = vpack.c.b16 %v957, %v953
    %v1158 = vpack.c.b16 %v962, %v958
    %v1159 = vpack.c.b16 %v963, %v959
    %v1160 = vpack.c.b16 %v964, %v960
    %v1161 = vpack.c.b16 %v965, %v961
    %v1162 = vpack.c.b16 %v970, %v966
    %v1163 = vpack.c.b16 %v971, %v967
    %v1164 = vpack.c.b16 %v972, %v968
    %v1165 = vpack.c.b16 %v973, %v969
    %v1166 = vpack.c.b16 %v978, %v974
    %v1167 = vpack.c.b16 %v979, %v975
    %v1168 = vpack.c.b16 %v980, %v976
    %v1169 = vpack.c.b16 %v981, %v977
    %v1170 = vpack.c.b16 %v986, %v982
    %v1171 = vpack.c.b16 %v987, %v983
    %v1172 = vpack.c.b16 %v988, %v984
    %v1173 = vpack.c.b16 %v989, %v985
    %v1174 = vpack.c.b16 %v994, %v990
    %v1175 = vpack.c.b16 %v995, %v991
    %v1176 = vpack.c.b16 %v996, %v992
    %v1177 = vpack.c.b16 %v997, %v993
    %v1178 = vpack.c.b16 %v1002, %v998
    %v1179 = vpack.c.b16 %v1003, %v999
    %v1180 = vpack.c.b16 %v1004, %v1000
    %v1181 = vpack.c.b16 %v1005, %v1001
    %v1182 = vpack.c.b16 %v1010, %v1006
    %v1183 = vpack.c.b16 %v1011, %v1007
    %v1184 = vpack.c.b16 %v1012, %v1008
    %v1185 = vpack.c.b16 %v1013, %v1009
    %v1186 = vpack.c.b16 %v1018, %v1014
    %v1187 = vpack.c.b16 %v1019, %v1015
    %v1188 = vpack.c.b16 %v1020, %v1016
    %v1189 = vpack.c.b16 %v1021, %v1017
    %v1190 = vpack.c.b16 %v1026, %v1022
    %v1191 = vpack.c.b16 %v1027, %v1023
    %v1192 = vpack.c.b16 %v1028, %v1024
    %v1193 = vpack.c.b16 %v1029, %v1025
    %v1194 = vpack.c.b16 %v1034, %v1030
    %v1195 = vpack.c.b16 %v1035, %v1031
    %v1196 = vpack.c.b16 %v1036, %v1032
    %v1197 = vpack.c.b16 %v1037, %v1033
    %v1198 = vpack.c.b16 %v1042, %v1038
    %v1199 = vpack.c.b16 %v1043, %v1039
    %v1200 = vpack.c.b16 %v1044, %v1040
    %v1201 = vpack.c.b16 %v1045, %v1041
    %v1202 = vpack.c.b16 %v1050, %v1046
    %v1203 = vpack.c.b16 %v1051, %v1047
    %v1204 = vpack.c.b16 %v1052, %v1048
    %v1205 = vpack.c.b16 %v1053, %v1049
    %v1206 = vpack.c.b16 %v1058, %v1054
    %v1207 = vpack.c.b16 %v1059, %v1055
    %v1208 = vpack.c.b16 %v1060, %v1056
    %v1209 = vpack.c.b16 %v1061, %v1057
    %v1210 = vpack.c.b16 %v1066, %v1062
    %v1211 = vpack.c.b16 %v1067, %v1063
    %v1212 = vpack.c.b16 %v1068, %v1064
    %v1213 = vpack.c.b16 %v1069, %v1065
    %v1214 = vpack.c.b16 %v1074, %v1070
    %v1215 = vpack.c.b16 %v1075, %v1071
    %v1216 = vpack.c.b16 %v1076, %v1072
    %v1217 = vpack.c.b16 %v1077, %v1073
    %v1218 = vpack.c.b16 %v1082, %v1078
    %v1219 = vpack.c.b16 %v1083, %v1079
    %v1220 = vpack.c.b16 %v1084, %v1080
    %v1221 = vpack.c.b16 %v1085, %v1081
    %v1222 = vpack.c.b16 %v1090, %v1086
    %v1223 = vpack.c.b16 %v1091, %v1087
    %v1224 = vpack.c.b16 %v1092, %v1088
    %v1225 = vpack.c.b16 %v1093, %v1089
    %v1226 = vpack.c.b16 %v1098, %v1094
    %v1227 = vpack.c.b16 %v1099, %v1095
    %v1228 = vpack.c.b16 %v1100, %v1096
    %v1229 = vpack.c.b16 %v1101, %v1097
    %1358 = vmatprep.subr.bf16.mxu0 %v1103
    %1359 = vmatpush1.bf16.msra.mxu0 %v1102
    %1360 = vmatprep.subr.bf16.mxu0 %v1107
    %1361 = vmatpush1.bf16.msra.mxu0 %v1106
    %1362 = vmatprep.subr.bf16.mxu0 %v1111
    %1363 = vmatpush1.bf16.msra.mxu0 %v1110
    %1364 = vmatprep.subr.bf16.mxu0 %v1115
    %1365 = vmatpush1.bf16.msra.mxu0 %v1114
    %1366 = vmatprep.subr.bf16.mxu0 %v1119
    %1367 = vmatpush1.bf16.msra.mxu0 %v1118
    %1368 = vmatprep.subr.bf16.mxu0 %v1123
    %1369 = vmatpush1.bf16.msra.mxu0 %v1122
    %1370 = vmatprep.subr.bf16.mxu0 %v1127
    %1371 = vmatpush1.bf16.msra.mxu0 %v1126
    %1372 = vmatprep.subr.bf16.mxu0 %v1131
    %1373 = vmatpush1.bf16.msra.mxu0 %v1130
    %1374 = vmatprep.subr.bf16.mxu0 %v1135
    %1375 = vmatpush1.bf16.msra.mxu0 %v1134
    %1376 = vmatprep.subr.bf16.mxu0 %v1139
    %1377 = vmatpush1.bf16.msra.mxu0 %v1138
    %1378 = vmatprep.subr.bf16.mxu0 %v1143
    %1379 = vmatpush1.bf16.msra.mxu0 %v1142
    %1380 = vmatprep.subr.bf16.mxu0 %v1147
    %1381 = vmatpush1.bf16.msra.mxu0 %v1146
    %1382 = vmatprep.subr.bf16.mxu0 %v1151
    %1383 = vmatpush1.bf16.msra.mxu0 %v1150
    %1384 = vmatprep.subr.bf16.mxu0 %v1155
    %1385 = vmatpush1.bf16.msra.mxu0 %v1154
    %1386 = vmatprep.subr.bf16.mxu0 %v1159
    %1387 = vmatpush1.bf16.msra.mxu0 %v1158
    %1388 = vmatprep.subr.bf16.mxu0 %v1163
    %1389 = vmatpush1.bf16.msra.mxu0 %v1162
    %1390 = vmatprep.mubr.bf16.mxu0 %v565
    %1391 = vmatmul.mubr.bf16.gmra.mrb[0].mxu0 %v564
    %v1392 = vpop.f32.mrb[0].mxu0
    %v1393 = vadd.f32 %v701, %v1392
    %v1394 = vpop.f32.mrb[0].mxu0
    %v1395 = vadd.f32 %v705, %v1394
    %v1396 = vpop.f32.mrb[0].mxu0
    %v1397 = vpop.f32.mrb[0].mxu0
    %1398 = vdwg.mxu0
    %1399 = vmatprep.subr.bf16.mxu0 %v1167
    %1400 = vmatpush1.bf16.msra.mxu0 %v1166
    %1401 = vmatprep.subr.bf16.mxu0 %v1171
    %1402 = vmatpush1.bf16.msra.mxu0 %v1170
    %1403 = vmatprep.subr.bf16.mxu0 %v1175
    %1404 = vmatpush1.bf16.msra.mxu0 %v1174
    %1405 = vmatprep.subr.bf16.mxu0 %v1179
    %1406 = vmatpush1.bf16.msra.mxu0 %v1178
    %1407 = vmatprep.subr.bf16.mxu0 %v1183
    %1408 = vmatpush1.bf16.msra.mxu0 %v1182
    %1409 = vmatprep.subr.bf16.mxu0 %v1187
    %1410 = vmatpush1.bf16.msra.mxu0 %v1186
    %1411 = vmatprep.subr.bf16.mxu0 %v1191
    %1412 = vmatpush1.bf16.msra.mxu0 %v1190
    %1413 = vmatprep.subr.bf16.mxu0 %v1195
    %1414 = vmatpush1.bf16.msra.mxu0 %v1194
    %1415 = vmatprep.subr.bf16.mxu0 %v1199
    %1416 = vmatpush1.bf16.msra.mxu0 %v1198
    %1417 = vmatprep.subr.bf16.mxu0 %v1203
    %1418 = vmatpush1.bf16.msra.mxu0 %v1202
    %1419 = vmatprep.subr.bf16.mxu0 %v1207
    %1420 = vmatpush1.bf16.msra.mxu0 %v1206
    %1421 = vmatprep.subr.bf16.mxu0 %v1211
    %1422 = vmatpush1.bf16.msra.mxu0 %v1210
    %1423 = vmatprep.subr.bf16.mxu0 %v1215
    %1424 = vmatpush1.bf16.msra.mxu0 %v1214
    %1425 = vmatprep.subr.bf16.mxu0 %v1219
    %1426 = vmatpush1.bf16.msra.mxu0 %v1218
    %1427 = vmatprep.subr.bf16.mxu0 %v1223
    %1428 = vmatpush1.bf16.msra.mxu0 %v1222
    %1429 = vmatprep.subr.bf16.mxu0 %v1227
    %1430 = vmatpush1.bf16.msra.mxu0 %v1226
    %1431 = vmatprep.mubr.bf16.mxu0 %v567
    %1432 = vmatmul.mubr.bf16.gmra.mrb[0].mxu0 %v566
    %v1433 = vpop.f32.mrb[0].mxu0
    %v1434 = vadd.f32 %v1393, %v1433
    %v1435 = vpop.f32.mrb[0].mxu0
    %v1436 = vadd.f32 %v1395, %v1435
    %v1437 = vpop.f32.mrb[0].mxu0
    %v1438 = vpop.f32.mrb[0].mxu0
    %1439 = vdwg.mxu0
    %1440 = vmatprep.subr.bf16.mxu0 %v1105
    %1441 = vmatpush1.bf16.msra.mxu0 %v1104
    %1442 = vmatprep.subr.bf16.mxu0 %v1109
    %1443 = vmatpush1.bf16.msra.mxu0 %v1108
    %1444 = vmatprep.subr.bf16.mxu0 %v1113
    %1445 = vmatpush1.bf16.msra.mxu0 %v1112
    %1446 = vmatprep.subr.bf16.mxu0 %v1117
    %1447 = vmatpush1.bf16.msra.mxu0 %v1116
    %1448 = vmatprep.subr.bf16.mxu0 %v1121
    %1449 = vmatpush1.bf16.msra.mxu0 %v1120
    %1450 = vmatprep.subr.bf16.mxu0 %v1125
    %1451 = vmatpush1.bf16.msra.mxu0 %v1124
    %1452 = vmatprep.subr.bf16.mxu0 %v1129
    %1453 = vmatpush1.bf16.msra.mxu0 %v1128
    %1454 = vmatprep.subr.bf16.mxu0 %v1133
    %1455 = vmatpush1.bf16.msra.mxu0 %v1132
    %1456 = vmatprep.subr.bf16.mxu0 %v1137
    %1457 = vmatpush1.bf16.msra.mxu0 %v1136
    %1458 = vmatprep.subr.bf16.mxu0 %v1141
    %1459 = vmatpush1.bf16.msra.mxu0 %v1140
    %1460 = vmatprep.subr.bf16.mxu0 %v1145
    %1461 = vmatpush1.bf16.msra.mxu0 %v1144
    %1462 = vmatprep.subr.bf16.mxu0 %v1149
    %1463 = vmatpush1.bf16.msra.mxu0 %v1148
    %1464 = vmatprep.subr.bf16.mxu0 %v1153
    %1465 = vmatpush1.bf16.msra.mxu0 %v1152
    %1466 = vmatprep.subr.bf16.mxu0 %v1157
    %1467 = vmatpush1.bf16.msra.mxu0 %v1156
    %1468 = vmatprep.subr.bf16.mxu0 %v1161
    %1469 = vmatpush1.bf16.msra.mxu0 %v1160
    %1470 = vmatprep.subr.bf16.mxu0 %v1165
    %1471 = vmatpush1.bf16.msra.mxu0 %v1164
    %1472 = vmatprep.mubr.bf16.mxu0 %v565
    %1473 = vmatmul.mubr.bf16.gmra.mrb[0].mxu0 %v564
    %v1474 = vpop.f32.mrb[0].mxu0
    %v1475 = vadd.f32 %v709, %v1474
    %v1476 = vpop.f32.mrb[0].mxu0
    %v1477 = vadd.f32 %v713, %v1476
    %v1478 = vpop.f32.mrb[0].mxu0
    %v1479 = vpop.f32.mrb[0].mxu0
    %1480 = vdwg.mxu0
    %1481 = vmatprep.subr.bf16.mxu0 %v1169
    %1482 = vmatpush1.bf16.msra.mxu0 %v1168
    %1483 = vmatprep.subr.bf16.mxu0 %v1173
    %1484 = vmatpush1.bf16.msra.mxu0 %v1172
    %1485 = vmatprep.subr.bf16.mxu0 %v1177
    %1486 = vmatpush1.bf16.msra.mxu0 %v1176
    %1487 = vmatprep.subr.bf16.mxu0 %v1181
    %1488 = vmatpush1.bf16.msra.mxu0 %v1180
    %1489 = vmatprep.subr.bf16.mxu0 %v1185
    %1490 = vmatpush1.bf16.msra.mxu0 %v1184
    %1491 = vmatprep.subr.bf16.mxu0 %v1189
    %1492 = vmatpush1.bf16.msra.mxu0 %v1188
    %1493 = vmatprep.subr.bf16.mxu0 %v1193
    %1494 = vmatpush1.bf16.msra.mxu0 %v1192
    %1495 = vmatprep.subr.bf16.mxu0 %v1197
    %1496 = vmatpush1.bf16.msra.mxu0 %v1196
    %1497 = vmatprep.subr.bf16.mxu0 %v1201
    %1498 = vmatpush1.bf16.msra.mxu0 %v1200
    %1499 = vmatprep.subr.bf16.mxu0 %v1205
    %1500 = vmatpush1.bf16.msra.mxu0 %v1204
    %1501 = vmatprep.subr.bf16.mxu0 %v1209
    %1502 = vmatpush1.bf16.msra.mxu0 %v1208
    %1503 = vmatprep.subr.bf16.mxu0 %v1213
    %1504 = vmatpush1.bf16.msra.mxu0 %v1212
    %1505 = vmatprep.subr.bf16.mxu0 %v1217
    %1506 = vmatpush1.bf16.msra.mxu0 %v1216
    %1507 = vmatprep.subr.bf16.mxu0 %v1221
    %1508 = vmatpush1.bf16.msra.mxu0 %v1220
    %1509 = vmatprep.subr.bf16.mxu0 %v1225
    %1510 = vmatpush1.bf16.msra.mxu0 %v1224
    %1511 = vmatprep.subr.bf16.mxu0 %v1229
    %1512 = vmatpush1.bf16.msra.mxu0 %v1228
    %1513 = vmatprep.mubr.bf16.mxu0 %v567
    %1514 = vmatmul.mubr.bf16.gmra.mrb[0].mxu0 %v566
    %v1515 = vpop.f32.mrb[0].mxu0
    %v1516 = vadd.f32 %v1475, %v1515
    %v1517 = vpop.f32.mrb[0].mxu0
    %v1518 = vadd.f32 %v1477, %v1517
    %v1519 = vpop.f32.mrb[0].mxu0
    %v1520 = vpop.f32.mrb[0].mxu0
    %1521 = vdwg.mxu0
    %v1522 = vmax.f32 %v1434, 0.0
    %v1523 = vmax.f32 %v1436, 0.0
    %v1524 = vmax.f32 %v1516, 0.0
    %v1525 = vmax.f32 %v1518, 0.0
    %v1526 = vld [vmem:[%s5] sm:$0xf]
    %v1527 = vpack.c.bf16 %v1522, %v1522
    %v1528 = vpack.c.bf16 %v1523, %v1523
    %v1529 = vpack.c.bf16 %v1524, %v1524
    %v1530 = vpack.c.bf16 %v1525, %v1525
    %s1531 = sld [smem:[#allocation2]]
    %v1532 = vstv %s1531
    %v1535 = vunpack.c.l.s4 1966171168
    %v1536 = vunpack.c.0.s8 %v1535
    %v1537 = vlaneseq
    %v1538 = vshrl.u32 %v1537, 7
    %v1539 = vsub.s32 %v1536, %v1538
    %v1540 = vrot.slane %v1526, %v1539
    %v1541 = vcombine.high %v1540, %v1540
    %v1543 = vunpack.c.l.s4 1966171168
    %v1544 = vunpack.c.0.s8 %v1543
    %v1545 = vlaneseq
    %v1546 = vshrl.u32 %v1545, 7
    %v1547 = vsub.s32 %v1544, %v1546
    %v1548 = vrot.slane %v1540, %v1547
    %v1550 = vunpack.c.l.s4 1966171168
    %v1551 = vunpack.c.0.s8 %v1550
    %v1552 = vlaneseq
    %v1553 = vshrl.u32 %v1552, 7
    %v1554 = vsub.s32 %v1551, %v1553
    %v1555 = vrot.slane %v1541, %v1554
    %v1556 = vcombine.high %v1548, %v1548
    %v1557 = vcombine.high %v1555, %v1555
    %1562 = vmatprep.subr.bf16.mxu0 %v1528
    %1563 = vmatpush1.bf16.xpose.msra.mxu0 %v1527
    %1564 = vmatprep.subr.bf16.mxu0 0
    %1565 = vmatpush1.bf16.xpose.msra.mxu0 0
    %1566 = vmatprep.subr.bf16.mxu0 0
    %1567 = vmatpush1.bf16.xpose.msra.mxu0 0
    %1568 = vmatprep.subr.bf16.mxu0 0
    %1569 = vmatpush1.bf16.xpose.msra.mxu0 0
    %1570 = vmatprep.subr.bf16.mxu0 0
    %1571 = vmatpush1.bf16.xpose.msra.mxu0 0
    %1572 = vmatprep.subr.bf16.mxu0 0
    %1573 = vmatpush1.bf16.xpose.msra.mxu0 0
    %1574 = vmatprep.subr.bf16.mxu0 0
    %1575 = vmatpush1.bf16.xpose.msra.mxu0 0
    %1576 = vmatprep.subr.bf16.mxu0 0
    %1577 = vmatpush1.bf16.xpose.msra.mxu0 0
    %1578 = vmatprep.subr.bf16.mxu0 0
    %1579 = vmatpush1.bf16.xpose.msra.mxu0 0
    %1580 = vmatprep.subr.bf16.mxu0 0
    %1581 = vmatpush1.bf16.xpose.msra.mxu0 0
    %1582 = vmatprep.subr.bf16.mxu0 0
    %1583 = vmatpush1.bf16.xpose.msra.mxu0 0
    %1584 = vmatprep.subr.bf16.mxu0 0
    %1585 = vmatpush1.bf16.xpose.msra.mxu0 0
    %1586 = vmatprep.subr.bf16.mxu0 0
    %1587 = vmatpush1.bf16.xpose.msra.mxu0 0
    %1588 = vmatprep.subr.bf16.mxu0 0
    %1589 = vmatpush1.bf16.xpose.msra.mxu0 0
    %1590 = vmatprep.subr.bf16.mxu0 0
    %1591 = vmatpush1.bf16.xpose.msra.mxu0 0
    %1592 = vmatprep.subr.bf16.mxu0 0
    %1593 = vmatpush1.bf16.xpose.msra.mxu0 0
    %1594 = vmatprep.mubr.bf16.mxu0 %v1555
    %1595 = vmatmul.mubr.bf16.gmra.mrb[0].mxu0 %v1548
    %v1596 = vpop.f32.mrb[0].mxu0
    %v1597 = vadd.f32 %v1532, %v1596
    %v1598 = vpop.f32.mrb[0].mxu0
    %v1599 = vpop.f32.mrb[0].mxu0
    %v1600 = vpop.f32.mrb[0].mxu0
    %1601 = vdwg.mxu0
    %1602 = vmatprep.subr.bf16.mxu0 %v1530
    %1603 = vmatpush1.bf16.xpose.msra.mxu0 %v1529
    %1604 = vmatprep.subr.bf16.mxu0 0
    %1605 = vmatpush1.bf16.xpose.msra.mxu0 0
    %1606 = vmatprep.subr.bf16.mxu0 0
    %1607 = vmatpush1.bf16.xpose.msra.mxu0 0
    %1608 = vmatprep.subr.bf16.mxu0 0
    %1609 = vmatpush1.bf16.xpose.msra.mxu0 0
    %1610 = vmatprep.subr.bf16.mxu0 0
    %1611 = vmatpush1.bf16.xpose.msra.mxu0 0
    %1612 = vmatprep.subr.bf16.mxu0 0
    %1613 = vmatpush1.bf16.xpose.msra.mxu0 0
    %1614 = vmatprep.subr.bf16.mxu0 0
    %1615 = vmatpush1.bf16.xpose.msra.mxu0 0
    %1616 = vmatprep.subr.bf16.mxu0 0
    %1617 = vmatpush1.bf16.xpose.msra.mxu0 0
    %1618 = vmatprep.subr.bf16.mxu0 0
    %1619 = vmatpush1.bf16.xpose.msra.mxu0 0
    %1620 = vmatprep.subr.bf16.mxu0 0
    %1621 = vmatpush1.bf16.xpose.msra.mxu0 0
    %1622 = vmatprep.subr.bf16.mxu0 0
    %1623 = vmatpush1.bf16.xpose.msra.mxu0 0
    %1624 = vmatprep.subr.bf16.mxu0 0
    %1625 = vmatpush1.bf16.xpose.msra.mxu0 0
    %1626 = vmatprep.subr.bf16.mxu0 0
    %1627 = vmatpush1.bf16.xpose.msra.mxu0 0
    %1628 = vmatprep.subr.bf16.mxu0 0
    %1629 = vmatpush1.bf16.xpose.msra.mxu0 0
    %1630 = vmatprep.subr.bf16.mxu0 0
    %1631 = vmatpush1.bf16.xpose.msra.mxu0 0
    %1632 = vmatprep.subr.bf16.mxu0 0
    %1633 = vmatpush1.bf16.xpose.msra.mxu0 0
    %1634 = vmatprep.mubr.bf16.mxu0 %v1557
    %1635 = vmatmul.mubr.bf16.gmra.mrb[0].mxu0 %v1556
    %v1636 = vpop.f32.mrb[0].mxu0
    %v1637 = vadd.f32 %v1597, %v1636
    %v1638 = vpop.f32.mrb[0].mxu0
    %v1639 = vpop.f32.mrb[0].mxu0
    %v1640 = vpop.f32.mrb[0].mxu0
    %1641 = vdwg.mxu0
    %v1642 = vxor.u32 %v1637, 2147483648
    %v1643 = vmul.f32 %v1642, 1.442695
    %v1644 = vpow.pop %v1643
    %v1645 = vadd.f32 %v1644, 1.0
    %v1646 = vrcp.pop %v1645
    %v1647 = vmul.f32 1.0, %v1646
    %vm1648 = vcmask 57344
    %1649 = vst.msk [vmem:[#allocation9] sm:$0x1] %vm1648, %v1647
    // Predicated region
    $region42: #{discriminator_forward.1} parent=1 // pred_check
      _
    $region43: #{discriminator_forward.1} parent=1 // pred_check_branch
      %1651 = sbr.rel (0) target = $region45
    $region44: #{discriminator_forward.1} parent=1 // pred_region
      %s1653 = ssub.s32 16, 16
      %1654 = vsyncadd [#allocation5], %s1653
      %s1656 = sshll.u32 [#allocation9], 4
      %s1657 = int_to_ptr.vmem [resolvable:$true] %s1656
      %1659 = dma.vmem_to_hbm [thread:$0]  %s1657, 16, %s7, [#allocation5]
    $region45: #{discriminator_forward.1} parent=1 // pred_fallthru
      _
    // Predicated region
    $region46: #{discriminator_forward.1} parent=1 // pred_check
      _
    $region47: #{discriminator_forward.1} parent=1 // pred_check_branch
      %1661 = sbr.rel (0) target = $region49
    $region48: #{discriminator_forward.1} parent=1 // pred_region
      %1662 = dma.done [#allocation5], 16
    $region49: #{discriminator_forward.1} parent=1 // pred_fallthru
      _
    %1663 = vsyncpa [#allocation4], 1
    %1664 = vsyncpa [#allocation7], 1
    %1665 = vsyncpa [#allocation5], 1

</llo_original>
